<compile_context>
chip_gen: v7x
topology: tpu7x:2x2x1
jax: 0.10.0
libtpu: 0.0.40
codegen_flags: <defaults>
</compile_context>

<pallas_src>
import jax
import jax.numpy as jnp
from jax.experimental import pallas as pl
from jax.experimental.pallas import tpu as pltpu


# -----------------------------------------------------------------------------
# Pallas kernel: fused MLP + affine coupling + interleaved writeback + log-det
# -----------------------------------------------------------------------------
def _coupling_kernel(slog_ref, sbias_ref,                  # SMEM scalars (1, 1)
                     z_ref, c_ref, logdet_ref,             # batch-tiled activations
                     w1_ref, b1_ref,                       # layer 1 (stacked [z | c] weight)
                     w2_ref, b2_ref,                       # layer 2
                     w3_ref, b3_ref,                       # layer 3, both heads pre-scattered
                     keep_ref,                             # (1, in_dim) pass-through mask
                     z_out_ref, logdet_out_ref):           # outputs
    in_dim = z_ref.shape[1]
    z_in = z_ref[...]
    z = z_in.astype(jnp.float32)

    # ---- MLP([z1, c]) : single layer-1 matmul over the lane-concatenated tile.
    # w1 has the de-interleave folded in: rows at transformed (z0) positions are
    # exactly zero, so dot(concat(z, c), w1_stacked) == dot(concat(z1, c), w1).
    x = jnp.concatenate([z_in.astype(jnp.bfloat16),
                         c_ref[...].astype(jnp.bfloat16)], axis=1)
    h = jnp.dot(x, w1_ref[...], preferred_element_type=jnp.float32) + b1_ref[...]
    h = jnp.maximum(h, 0.0).astype(jnp.bfloat16)
    h = jnp.dot(h, w2_ref[...], preferred_element_type=jnp.float32) + b2_ref[...]
    h = jnp.maximum(h, 0.0).astype(jnp.bfloat16)
    # Last layer emits [s_pre_full | shift_full], each already scattered to the
    # interleaved feature positions (zero columns / zero bias at pass-through
    # positions), so no per-tile scatter matmuls are needed.
    p = jnp.dot(h, w3_ref[...], preferred_element_type=jnp.float32) + b3_ref[...]

    s_full = jnp.tanh(p[:, :in_dim]) * slog_ref[0, 0] + sbias_ref[0, 0]
    shift = p[:, in_dim:]                                   # exactly 0 at kept positions
    keep = keep_ref[...]                                    # 1.0 at pass-through positions
    scale = jnp.where(keep > 0.5, 1.0, jnp.exp(s_full))     # exactly 1 at kept positions

    z_out_ref[...] = (z * scale + shift).astype(z_out_ref.dtype)
    # log_df_dz += sum over transformed positions of s
    logdet_out_ref[...] = logdet_ref[...] + jnp.sum(
        s_full * (1.0 - keep), axis=1, keepdims=True)


# -----------------------------------------------------------------------------
# Wrapper: weight-side prep (tiny, O(weights)) + pallas_call
# -----------------------------------------------------------------------------
def conditional_affine_coupling_forward(z, c, log_df_dz, params, odd=False,
                                        batch_tile=8192):
    """Forward of ConditionalAffineCoupling.

    z:          (B, in_dim)
    c:          (B, c_dim)
    log_df_dz:  (B,)
    params:     dict with MLP weights and coupling scalars
    batch_tile: rows per grid step (tunable; must be a multiple of 8)
    """
    assert batch_tile % 8 == 0 and batch_tile >= 8, "batch_tile must be a multiple of 8"
    B, in_dim = z.shape
    assert in_dim % 2 == 0, "interleaved squeeze1d assumes even in_dim"
    c_dim = c.shape[1]
    in_chs = in_dim // 2
    out_chs = in_dim - in_chs
    H = params["w1"].shape[1]
    f32 = jnp.float32

    # Interleaved positions of the transformed half (z0) and conditioning half (z1).
    if odd:
        z0_pos = jnp.arange(1, in_dim, 2)
        z1_pos = jnp.arange(0, in_dim, 2)
    else:
        z0_pos = jnp.arange(0, in_dim, 2)
        z1_pos = jnp.arange(1, in_dim, 2)

    # ---- fold squeeze1d + concat into layer-1 weights (one-time, weight-sized)
    w1 = params["w1"].astype(f32)                     # (in_chs + c_dim, H)
    w1z_full = jnp.zeros((in_dim, H), f32).at[z1_pos].set(w1[:in_chs])
    w1s = jnp.concatenate([w1z_full, w1[in_chs:]], axis=0).astype(jnp.bfloat16)

    # ---- fold unsqueeze1d (column scatter) of BOTH heads into layer-3 weights
    w3 = params["w3"].astype(f32)                     # (H, 2*out_chs): [t | s]
    b3 = params["b3"].astype(f32)                     # (1, 2*out_chs)
    w3_s_full = jnp.zeros((H, in_dim), f32).at[:, z0_pos].set(w3[:, out_chs:])
    w3_t_full = jnp.zeros((H, in_dim), f32).at[:, z0_pos].set(w3[:, :out_chs])
    w3sc = jnp.concatenate([w3_s_full, w3_t_full], axis=1).astype(jnp.bfloat16)
    b3_s_full = jnp.zeros((1, in_dim), f32).at[:, z0_pos].set(b3[:, out_chs:])
    b3_t_full = jnp.zeros((1, in_dim), f32).at[:, z0_pos].set(b3[:, :out_chs])
    b3sc = jnp.concatenate([b3_s_full, b3_t_full], axis=1)          # (1, 2*in_dim) f32

    keep = jnp.zeros((1, in_dim), f32).at[0, z1_pos].set(1.0)       # pass-through mask

    w2 = params["w2"].astype(jnp.bfloat16)
    b1 = params["b1"].astype(f32)
    b2 = params["b2"].astype(f32)

    logdet2d = log_df_dz.reshape(B, 1).astype(f32)

    # ---- batch-tile / grid / VMEM sizing -------------------------------------
    # per-row f32 activation bytes (in + out), conservative upper bound
    per_row_bytes = (2 * in_dim + c_dim + 2) * 4
    # cap the tile so double-buffered activation tiles stay well under v7x's VMEM
    cap = max(8, ((32 * 1024 * 1024) // (2 * per_row_bytes)) // 8 * 8)
    TB = min(B, batch_tile, cap)
    # If the whole (large) batch fits in one tile, split it so the "parallel"
    # grid axis has >= 2 steps and both v7x TensorCores get work.
    if TB == B and B >= 2048 and (B // 2) % 8 == 0:
        TB = B // 2
    grid = (pl.cdiv(B, TB),)

    tile_bytes = TB * per_row_bytes
    vmem_limit = int(min(48 * 1024 * 1024,
                         max(32 * 1024 * 1024, 2 * tile_bytes + 4 * 1024 * 1024)))

    act = lambda feat: pl.BlockSpec((TB, feat), lambda i: (i, 0))
    wgt = lambda arr: pl.BlockSpec(arr.shape, lambda i: (0,) * arr.ndim)
    smem = pl.BlockSpec(memory_space=pltpu.MemorySpace.SMEM)

    s_log_scale = params["s_log_scale"].reshape(1, 1).astype(f32)
    s_bias = params["s_bias"].reshape(1, 1).astype(f32)

    z_new, logdet_new = pl.pallas_call(
        _coupling_kernel,
        grid=grid,
        out_shape=(
            jax.ShapeDtypeStruct((B, in_dim), z.dtype),
            jax.ShapeDtypeStruct((B, 1), f32),
        ),
        in_specs=[
            smem, smem,                                   # s_log_scale, s_bias
            act(in_dim), act(c_dim), act(1),              # z, c, log_df_dz
            wgt(w1s), wgt(b1),                            # layer 1
            wgt(w2), wgt(b2),                             # layer 2
            wgt(w3sc), wgt(b3sc),                         # layer 3 (both heads, scattered)
            wgt(keep),                                    # keep mask
        ],
        out_specs=(act(in_dim), act(1)),
        compiler_params=pltpu.CompilerParams(
            dimension_semantics=("parallel",),            # v7x: shard batch over 2 TCs
            vmem_limit_bytes=vmem_limit,
        ),
    )(
        s_log_scale, s_bias,
        z, c, logdet2d,
        w1s, b1, w2, b2, w3sc, b3sc, keep,
    )
    return z_new, logdet_new.reshape(B).astype(log_df_dz.dtype)


# -----------------------------------------------------------------------------
# Pure-JAX references (mirror the PyTorch forward); matmul_dtype lets us emulate
# the kernel's bf16-operand / f32-accumulate matmuls for a tight comparison.
# -----------------------------------------------------------------------------
def reference_forward(z, c, log_df_dz, params, odd=False, matmul_dtype=jnp.float32):
    B, in_dim = z.shape
    in_chs = in_dim // 2
    out_chs = in_dim - in_chs
    if odd:
        z0, z1 = z[:, 1::2], z[:, 0::2]
    else:
        z0, z1 = z[:, 0::2], z[:, 1::2]

    def dot(a, w):
        return jnp.dot(a.astype(matmul_dtype), w.astype(matmul_dtype),
                       preferred_element_type=jnp.float32)

    x = jnp.concatenate([z1, c], axis=1).astype(jnp.float32)
    h = jnp.maximum(dot(x, params["w1"]) + params["b1"], 0.0)
    h = jnp.maximum(dot(h, params["w2"]) + params["b2"], 0.0)
    p = dot(h, params["w3"]) + params["b3"]
    t = p[:, :out_chs]
    s = jnp.tanh(p[:, out_chs:]) * params["s_log_scale"][0, 0] + params["s_bias"][0, 0]
    z0n = z0 * jnp.exp(s) + t
    logdet = log_df_dz + jnp.sum(s, axis=1)
    if odd:
        z_new = jnp.stack([z1, z0n], axis=2).reshape(B, in_dim)
    else:
        z_new = jnp.stack([z0n, z1], axis=2).reshape(B, in_dim)
    return z_new, logdet


# -----------------------------------------------------------------------------
# Deterministic parameter construction (synthetic; matches __init__ shapes)
# -----------------------------------------------------------------------------
def make_params(key, in_dim, c_dim, hidden=32):
    in_chs = in_dim // 2
    out_chs = in_dim - in_chs
    d_in = in_chs + c_dim
    d_out = out_chs * 2
    ks = jax.random.split(key, 8)
    # TODO(synk): the exact MLP definition lives in models/flows/modules.py of the
    # original repo; a standard 3-layer ReLU MLP with hidden=32 is used here.
    return {
        "s_log_scale": (jax.random.normal(ks[0], (1, 1)) * 0.01).astype(jnp.float32),
        "s_bias":      (jax.random.normal(ks[1], (1, 1)) * 0.01).astype(jnp.float32),
        "w1": (jax.random.normal(ks[2], (d_in, hidden)) * (1.0 / jnp.sqrt(d_in))).astype(jnp.float32),
        "b1": (jax.random.normal(ks[3], (1, hidden)) * 0.01).astype(jnp.float32),
        "w2": (jax.random.normal(ks[4], (hidden, hidden)) * (1.0 / jnp.sqrt(hidden))).astype(jnp.float32),
        "b2": (jax.random.normal(ks[5], (1, hidden)) * 0.01).astype(jnp.float32),
        "w3": (jax.random.normal(ks[6], (hidden, d_out)) * (1.0 / jnp.sqrt(hidden))).astype(jnp.float32),
        "b3": (jax.random.normal(ks[7], (1, d_out)) * 0.01).astype(jnp.float32),
    }


if __name__ == "__main__":
    master = jax.random.PRNGKey(0)
    configs = [
        # small canonical shape
        dict(B=8, in_dim=16, c_dim=8, hidden=32, batch_tile=8192),
        # multi-tile grid with a ragged (masked) last tile
        dict(B=1000, in_dim=16, c_dim=8, hidden=32, batch_tile=256),
    ]

    for ci, cfg in enumerate(configs):
        key = jax.random.fold_in(master, ci)
        k_z, k_c, k_ld, k_p = jax.random.split(key, 4)
        B, in_dim, c_dim, hidden = cfg["B"], cfg["in_dim"], cfg["c_dim"], cfg["hidden"]
        z = jax.random.normal(k_z, (B, in_dim), dtype=jnp.float32)
        c = jax.random.normal(k_c, (B, c_dim), dtype=jnp.float32)
        log_df_dz = jax.random.normal(k_ld, (B,), dtype=jnp.float32)
        params = make_params(k_p, in_dim, c_dim, hidden)

        for odd in (False, True):
            z_out, logdet_out = conditional_affine_coupling_forward(
                z, c, log_df_dz, params, odd=odd, batch_tile=cfg["batch_tile"])
            jax.block_until_ready((z_out, logdet_out))

            # Tight check vs. a reference that uses the same bf16-operand /
            # f32-accumulate matmul numerics as the kernel.
            z_ref, ld_ref = reference_forward(z, c, log_df_dz, params, odd=odd,
                                              matmul_dtype=jnp.bfloat16)
            assert jnp.allclose(z_out, z_ref, atol=5e-3, rtol=5e-3), \
                f"z mismatch vs bf16 reference (cfg={ci}, odd={odd})"
            assert jnp.allclose(logdet_out, ld_ref, atol=5e-3, rtol=5e-3), \
                f"logdet mismatch vs bf16 reference (cfg={ci}, odd={odd})"

            # Sanity check vs. the full-f32 PyTorch-equivalent forward.
            z_ref32, ld_ref32 = reference_forward(z, c, log_df_dz, params, odd=odd,
                                                  matmul_dtype=jnp.float32)
            assert jnp.allclose(z_out, z_ref32, atol=3e-2, rtol=3e-2), \
                f"z mismatch vs f32 reference (cfg={ci}, odd={odd})"
            assert jnp.allclose(logdet_out, ld_ref32, atol=3e-2, rtol=3e-2), \
                f"logdet mismatch vs f32 reference (cfg={ci}, odd={odd})"

    print("KERNEL_OK")
</pallas_src>

<mosaic_0001>
module attributes {stable_mosaic.version = 11 : i64} {
  func.func @_coupling_kernel(%arg0: i32, %arg1: memref<1x1xf32, #tpu.memory_space<smem>>, %arg2: memref<1x1xf32, #tpu.memory_space<smem>>, %arg3: memref<8x16xf32, #tpu.memory_space<vmem>>, %arg4: memref<8x8xf32, #tpu.memory_space<vmem>>, %arg5: memref<8x1xf32, #tpu.memory_space<vmem>>, %arg6: memref<24x32xbf16, #tpu.memory_space<vmem>>, %arg7: memref<1x32xf32, #tpu.memory_space<vmem>>, %arg8: memref<32x32xbf16, #tpu.memory_space<vmem>>, %arg9: memref<1x32xf32, #tpu.memory_space<vmem>>, %arg10: memref<32x32xbf16, #tpu.memory_space<vmem>>, %arg11: memref<1x32xf32, #tpu.memory_space<vmem>>, %arg12: memref<1x16xf32, #tpu.memory_space<vmem>>, %arg13: memref<8x16xf32, #tpu.memory_space<vmem>>, %arg14: memref<8x1xf32, #tpu.memory_space<vmem>>) attributes {dimension_semantics = [#tpu.dimension_semantics<parallel>], iteration_bounds = array<i64: 1>, scalar_prefetch = 0 : i64, scratch_operands = 0 : i64, tpu.core_type = #tpu.core_type<tc>, window_params = [{transform_indices = @transform_0, window_bounds = array<i64: 1, 1>}, {transform_indices = @transform_1, window_bounds = array<i64: 1, 1>}, {transform_indices = @transform_2, window_bounds = array<i64: 8, 16>}, {transform_indices = @transform_3, window_bounds = array<i64: 8, 8>}, {transform_indices = @transform_4, window_bounds = array<i64: 8, 1>}, {pipeline_mode = #tpu.pipeline_mode<synchronous>, transform_indices = @transform_5, window_bounds = array<i64: 24, 32>}, {pipeline_mode = #tpu.pipeline_mode<synchronous>, transform_indices = @transform_6, window_bounds = array<i64: 1, 32>}, {pipeline_mode = #tpu.pipeline_mode<synchronous>, transform_indices = @transform_7, window_bounds = array<i64: 32, 32>}, {pipeline_mode = #tpu.pipeline_mode<synchronous>, transform_indices = @transform_8, window_bounds = array<i64: 1, 32>}, {pipeline_mode = #tpu.pipeline_mode<synchronous>, transform_indices = @transform_9, window_bounds = array<i64: 32, 32>}, {pipeline_mode = #tpu.pipeline_mode<synchronous>, transform_indices = @transform_10, window_bounds = array<i64: 1, 32>}, {pipeline_mode = #tpu.pipeline_mode<synchronous>, transform_indices = @transform_11, window_bounds = array<i64: 1, 16>}, {transform_indices = @transform_12, window_bounds = array<i64: 8, 16>}, {transform_indices = @transform_13, window_bounds = array<i64: 8, 1>}]} {
    %c0 = arith.constant 0 : index
    %c0_0 = arith.constant 0 : index
    %0 = vector.load %arg3[%c0, %c0_0] : memref<8x16xf32, #tpu.memory_space<vmem>>, vector<8x16xf32>
    %1 = arith.truncf %0 : vector<8x16xf32> to vector<8x16xbf16>
    %c0_1 = arith.constant 0 : index
    %c0_2 = arith.constant 0 : index
    %2 = vector.load %arg4[%c0_1, %c0_2] : memref<8x8xf32, #tpu.memory_space<vmem>>, vector<8x8xf32>
    %3 = arith.truncf %2 : vector<8x8xf32> to vector<8x8xbf16>
    %4 = tpu.concatenate %1, %3 in 1 : vector<8x16xbf16>, vector<8x8xbf16> -> vector<8x24xbf16>
    %c0_3 = arith.constant 0 : index
    %c0_4 = arith.constant 0 : index
    %5 = vector.load %arg6[%c0_3, %c0_4] : memref<24x32xbf16, #tpu.memory_space<vmem>>, vector<24x32xbf16>
    %cst = arith.constant dense<0.000000e+00> : vector<8x32xf32>
    %6 = tpu.matmul %4, %5, %cst {dimension_numbers = #tpu.dot_dimension_numbers<[1], [0], [0], [1], [0, 0, 1, 1], [], []>} : vector<8x24xbf16>, vector<24x32xbf16>, vector<8x32xf32> -> vector<8x32xf32>
    %c0_5 = arith.constant 0 : index
    %c0_6 = arith.constant 0 : index
    %7 = vector.load %arg7[%c0_5, %c0_6] : memref<1x32xf32, #tpu.memory_space<vmem>>, vector<1x32xf32>
    %8 = vector.broadcast %7 : vector<1x32xf32> to vector<8x32xf32>
    %9 = arith.addf %6, %8 : vector<8x32xf32>
    %cst_7 = arith.constant 0.000000e+00 : f32
    %10 = vector.broadcast %cst_7 : f32 to vector<8x32xf32>
    %11 = arith.maximumf %9, %10 : vector<8x32xf32>
    %12 = arith.truncf %11 : vector<8x32xf32> to vector<8x32xbf16>
    %c0_8 = arith.constant 0 : index
    %c0_9 = arith.constant 0 : index
    %13 = vector.load %arg8[%c0_8, %c0_9] : memref<32x32xbf16, #tpu.memory_space<vmem>>, vector<32x32xbf16>
    %cst_10 = arith.constant dense<0.000000e+00> : vector<8x32xf32>
    %14 = tpu.matmul %12, %13, %cst_10 {dimension_numbers = #tpu.dot_dimension_numbers<[1], [0], [0], [1], [0, 0, 1, 1], [], []>} : vector<8x32xbf16>, vector<32x32xbf16>, vector<8x32xf32> -> vector<8x32xf32>
    %c0_11 = arith.constant 0 : index
    %c0_12 = arith.constant 0 : index
    %15 = vector.load %arg9[%c0_11, %c0_12] : memref<1x32xf32, #tpu.memory_space<vmem>>, vector<1x32xf32>
    %16 = vector.broadcast %15 : vector<1x32xf32> to vector<8x32xf32>
    %17 = arith.addf %14, %16 : vector<8x32xf32>
    %cst_13 = arith.constant 0.000000e+00 : f32
    %18 = vector.broadcast %cst_13 : f32 to vector<8x32xf32>
    %19 = arith.maximumf %17, %18 : vector<8x32xf32>
    %20 = arith.truncf %19 : vector<8x32xf32> to vector<8x32xbf16>
    %c0_14 = arith.constant 0 : index
    %c0_15 = arith.constant 0 : index
    %21 = vector.load %arg10[%c0_14, %c0_15] : memref<32x32xbf16, #tpu.memory_space<vmem>>, vector<32x32xbf16>
    %cst_16 = arith.constant dense<0.000000e+00> : vector<8x32xf32>
    %22 = tpu.matmul %20, %21, %cst_16 {dimension_numbers = #tpu.dot_dimension_numbers<[1], [0], [0], [1], [0, 0, 1, 1], [], []>} : vector<8x32xbf16>, vector<32x32xbf16>, vector<8x32xf32> -> vector<8x32xf32>
    %c0_17 = arith.constant 0 : index
    %c0_18 = arith.constant 0 : index
    %23 = vector.load %arg11[%c0_17, %c0_18] : memref<1x32xf32, #tpu.memory_space<vmem>>, vector<1x32xf32>
    %24 = vector.broadcast %23 : vector<1x32xf32> to vector<8x32xf32>
    %25 = arith.addf %22, %24 : vector<8x32xf32>
    %26 = vector.extract_strided_slice %25 {offsets = [0, 0], sizes = [8, 16], strides = [1, 1]} : vector<8x32xf32> to vector<8x16xf32>
    %27 = math.tanh %26 : vector<8x16xf32>
    %c0_19 = arith.constant 0 : index
    %c0_20 = arith.constant 0 : index
    %28 = memref.load %arg1[%c0_19, %c0_20] : memref<1x1xf32, #tpu.memory_space<smem>>
    %29 = vector.broadcast %28 : f32 to vector<8x16xf32>
    %30 = arith.mulf %27, %29 : vector<8x16xf32>
    %c0_21 = arith.constant 0 : index
    %c0_22 = arith.constant 0 : index
    %31 = memref.load %arg2[%c0_21, %c0_22] : memref<1x1xf32, #tpu.memory_space<smem>>
    %32 = vector.broadcast %31 : f32 to vector<8x16xf32>
    %33 = arith.addf %30, %32 : vector<8x16xf32>
    %34 = vector.extract_strided_slice %25 {offsets = [0, 16], sizes = [8, 16], strides = [1, 1]} : vector<8x32xf32> to vector<8x16xf32>
    %c0_23 = arith.constant 0 : index
    %c0_24 = arith.constant 0 : index
    %35 = vector.load %arg12[%c0_23, %c0_24] : memref<1x16xf32, #tpu.memory_space<vmem>>, vector<1x16xf32>
    %cst_25 = arith.constant 5.000000e-01 : f32
    %36 = vector.broadcast %cst_25 : f32 to vector<1x16xf32>
    %37 = arith.cmpf ogt, %35, %36 : vector<1x16xf32>
    %38 = math.exp %33 : vector<8x16xf32>
    %cst_26 = arith.constant 1.000000e+00 : f32
    %39 = vector.shape_cast %37 : vector<1x16xi1> to vector<1x16xi1>
    %40 = vector.broadcast %39 : vector<1x16xi1> to vector<8x16xi1>
    %41 = vector.broadcast %cst_26 : f32 to vector<8x16xf32>
    %42 = arith.select %40, %41, %38 : vector<8x16xi1>, vector<8x16xf32>
    %43 = arith.mulf %0, %42 : vector<8x16xf32>
    %44 = arith.addf %43, %34 : vector<8x16xf32>
    %c0_27 = arith.constant 0 : index
    %c0_28 = arith.constant 0 : index
    %45 = vector.load %arg13[%c0_27, %c0_28] : memref<8x16xf32, #tpu.memory_space<vmem>>, vector<8x16xf32>
    tpu.vector_store %arg13[%c0_27, %c0_28], %44 {strides = array<i32>} : memref<8x16xf32, #tpu.memory_space<vmem>>, vector<8x16xf32>,
    %c0_29 = arith.constant 0 : index
    %c0_30 = arith.constant 0 : index
    %46 = vector.load %arg5[%c0_29, %c0_30] : memref<8x1xf32, #tpu.memory_space<vmem>>, vector<8x1xf32>
    %cst_31 = arith.constant 1.000000e+00 : f32
    %47 = vector.broadcast %cst_31 : f32 to vector<1x16xf32>
    %48 = arith.subf %47, %35 : vector<1x16xf32>
    %49 = vector.broadcast %48 : vector<1x16xf32> to vector<8x16xf32>
    %50 = arith.mulf %33, %49 : vector<8x16xf32>
    %cst_32 = arith.constant dense<0.000000e+00> : vector<8xf32>
    %51 = vector.multi_reduction <add>, %50, %cst_32 [1] : vector<8x16xf32> to vector<8xf32>
    %52 = vector.shape_cast %51 : vector<8xf32> to vector<8x1xf32>
    %53 = arith.addf %46, %52 : vector<8x1xf32>
    %c0_33 = arith.constant 0 : index
    %c0_34 = arith.constant 0 : index
    %54 = vector.load %arg14[%c0_33, %c0_34] : memref<8x1xf32, #tpu.memory_space<vmem>>, vector<8x1xf32>
    tpu.vector_store %arg14[%c0_33, %c0_34], %53 {strides = array<i32>} : memref<8x1xf32, #tpu.memory_space<vmem>>, vector<8x1xf32>,
    return
  }
  func.func @transform_0(%arg0: i32) -> (i32, i32) {
    %c0_i32 = arith.constant 0 : i32
    %c0_i32_0 = arith.constant 0 : i32
    %c0_i32_1 = arith.constant 0 : i32
    return %c0_i32, %c0_i32_0 : i32, i32
  }
  func.func @transform_1(%arg0: i32) -> (i32, i32) {
    %c0_i32 = arith.constant 0 : i32
    %c0_i32_0 = arith.constant 0 : i32
    %c0_i32_1 = arith.constant 0 : i32
    return %c0_i32, %c0_i32_0 : i32, i32
  }
  func.func @transform_2(%arg0: i32) -> (i32, i32) {
    %c0_i32 = arith.constant 0 : i32
    %c0_i32_0 = arith.constant 0 : i32
    return %arg0, %c0_i32 : i32, i32
  }
  func.func @transform_3(%arg0: i32) -> (i32, i32) {
    %c0_i32 = arith.constant 0 : i32
    %c0_i32_0 = arith.constant 0 : i32
    return %arg0, %c0_i32 : i32, i32
  }
  func.func @transform_4(%arg0: i32) -> (i32, i32) {
    %c0_i32 = arith.constant 0 : i32
    %c0_i32_0 = arith.constant 0 : i32
    return %arg0, %c0_i32 : i32, i32
  }
  func.func @transform_5(%arg0: i32) -> (i32, i32) {
    %c0_i32 = arith.constant 0 : i32
    %c0_i32_0 = arith.constant 0 : i32
    %c0_i32_1 = arith.constant 0 : i32
    return %c0_i32, %c0_i32_0 : i32, i32
  }
  func.func @transform_6(%arg0: i32) -> (i32, i32) {
    %c0_i32 = arith.constant 0 : i32
    %c0_i32_0 = arith.constant 0 : i32
    %c0_i32_1 = arith.constant 0 : i32
    return %c0_i32, %c0_i32_0 : i32, i32
  }
  func.func @transform_7(%arg0: i32) -> (i32, i32) {
    %c0_i32 = arith.constant 0 : i32
    %c0_i32_0 = arith.constant 0 : i32
    %c0_i32_1 = arith.constant 0 : i32
    return %c0_i32, %c0_i32_0 : i32, i32
  }
  func.func @transform_8(%arg0: i32) -> (i32, i32) {
    %c0_i32 = arith.constant 0 : i32
    %c0_i32_0 = arith.constant 0 : i32
    %c0_i32_1 = arith.constant 0 : i32
    return %c0_i32, %c0_i32_0 : i32, i32
  }
  func.func @transform_9(%arg0: i32) -> (i32, i32) {
    %c0_i32 = arith.constant 0 : i32
    %c0_i32_0 = arith.constant 0 : i32
    %c0_i32_1 = arith.constant 0 : i32
    return %c0_i32, %c0_i32_0 : i32, i32
  }
  func.func @transform_10(%arg0: i32) -> (i32, i32) {
    %c0_i32 = arith.constant 0 : i32
    %c0_i32_0 = arith.constant 0 : i32
    %c0_i32_1 = arith.constant 0 : i32
    return %c0_i32, %c0_i32_0 : i32, i32
  }
  func.func @transform_11(%arg0: i32) -> (i32, i32) {
    %c0_i32 = arith.constant 0 : i32
    %c0_i32_0 = arith.constant 0 : i32
    %c0_i32_1 = arith.constant 0 : i32
    return %c0_i32, %c0_i32_0 : i32, i32
  }
  func.func @transform_12(%arg0: i32) -> (i32, i32) {
    %c0_i32 = arith.constant 0 : i32
    %c0_i32_0 = arith.constant 0 : i32
    return %arg0, %c0_i32 : i32, i32
  }
  func.func @transform_13(%arg0: i32) -> (i32, i32) {
    %c0_i32 = arith.constant 0 : i32
    %c0_i32_0 = arith.constant 0 : i32
    return %arg0, %c0_i32 : i32, i32
  }
}

</mosaic_0001>

<llo_original>
// kernel: tpu_custom_call.1
$region0: #{tpu_custom_call.1}
  #allocation0 [shape = 'u32[]', space=smem, size = 0x4, offset = 0x4, fixed_abs, tag = 'smem constant byte address 0x4 - core index']
  #allocation1 [shape = 'u32[144,128]{1,0:T(1,128)}', space=vmem, size = 0x12000, scoped, tag = 'internal scratch']
  #allocation2 [shape = 'f32[1,1]{1,0:T(1,128)S(6)}', space=smem, size = 0x200, scoped, tag = 'scoped memory for tpu_custom_call.1']
  #allocation3 [shape = 'f32[1,1]{1,0:T(1,128)S(6)}', space=smem, size = 0x200, scoped, tag = 'scoped memory for tpu_custom_call.1']
  %s0 = inlined_call_operand.<no memory space> [shape: f32[1,1], index: 0, kind: input, shape index: {}]
  %s1 = inlined_call_operand.<no memory space> [shape: f32[1,1], index: 1, kind: input, shape index: {}]
  %s2 = inlined_call_operand.hbm [shape: f32[8,16], index: 2, kind: input, shape index: {}]
  %s3 = inlined_call_operand.hbm [shape: f32[8,8], index: 3, kind: input, shape index: {}]
  %s4 = inlined_call_operand.vmem [shape: f32[8,1], index: 4, kind: input, shape index: {}]
  %s5 = inlined_call_operand.hbm [shape: bf16[24,32], index: 5, kind: input, shape index: {}]
  %s6 = inlined_call_operand.vmem [shape: f32[1,32], index: 6, kind: input, shape index: {}]
  %s7 = inlined_call_operand.vmem [shape: bf16[32,32], index: 7, kind: input, shape index: {}]
  %s8 = inlined_call_operand.vmem [shape: f32[1,32], index: 8, kind: input, shape index: {}]
  %s9 = inlined_call_operand.vmem [shape: bf16[32,32], index: 9, kind: input, shape index: {}]
  %s10 = inlined_call_operand.vmem [shape: f32[1,32], index: 10, kind: input, shape index: {}]
  %s11 = inlined_call_operand.vmem [shape: f32[1,16], index: 11, kind: input, shape index: {}]
  %s12 = inlined_call_operand.hbm [shape: f32[8,16], index: 12, kind: output, shape index: {0}]
  %s13 = inlined_call_operand.vmem [shape: f32[8,1], index: 13, kind: output, shape index: {1}]
  %14 = xla_tuple %s12, %s13
  %s15 = sld [smem:[#allocation0]]
  $region78: #{tpu_custom_call.1} parent=0
    _
  %s17 = ssub.s32 1, %s15
  %s18 = scalar_select 0, %s17, %s15
  %19 = sst [smem:[#allocation2]] %s0
  %20 = sst [smem:[#allocation3]] %s1
  $region1: #{tpu_custom_call.1} parent=0
    #allocation4 [shape = 'u8[4096]{0}', space=vmem, size = 0x1000, scoped, tag = 'input window, operand 2, single buffered']
    #allocation5 [shape = 's32[1]{0}', space=sflag, size = 0x4, scoped, tag = 'scoped memory for tpu_custom_call.1']
    #allocation6 [shape = 's32[1]{0}', space=sflag, size = 0x4, scoped, tag = 'scoped memory for tpu_custom_call.1']
    #allocation7 [shape = 'u8[4096]{0}', space=vmem, size = 0x1000, scoped, tag = 'input window, operand 3, single buffered']
    #allocation8 [shape = 's32[1]{0}', space=sflag, size = 0x4, scoped, tag = 'scoped memory for tpu_custom_call.1']
    #allocation9 [shape = 'u8[6144]{0}', space=vmem, size = 0x1800, scoped, tag = 'input window, operand 5, single buffered']
    #allocation10 [shape = 'u8[4096]{0}', space=vmem, size = 0x1000, scoped, tag = 'output window, operand 0, single buffered']
    %21 = vsyncpa [#allocation5], 0
    %22 = vsyncpa [#allocation8], 0
    %23 = vsyncpa [#allocation6], 0
    // Predicated region
    $region2: #{tpu_custom_call.1} parent=1 // pred_check
      _
    $region3: #{tpu_custom_call.1} parent=1 // pred_check_branch
      %25 = sbr.rel (0) target = $region5
    $region4: #{tpu_custom_call.1} parent=1 // pred_region
      _
    $region5: #{tpu_custom_call.1} parent=1 // pred_fallthru
      _
    // Predicated region
    $region6: #{tpu_custom_call.1} parent=1 // pred_check
      _
    $region7: #{tpu_custom_call.1} parent=1 // pred_check_branch
      %27 = sbr.rel (0) target = $region9
    $region8: #{tpu_custom_call.1} parent=1 // pred_region
      _
    $region9: #{tpu_custom_call.1} parent=1 // pred_fallthru
      _
    // Predicated region
    $region10: #{tpu_custom_call.1} parent=1 // pred_check
      _
    $region11: #{tpu_custom_call.1} parent=1 // pred_check_branch
      %29 = sbr.rel (0) target = $region13
    $region12: #{tpu_custom_call.1} parent=1 // pred_region
      %s31 = ssub.s32 128, 128
      %32 = vsyncadd [#allocation5], %s31
      %s34 = sshll.u32 [#allocation4], 4
      %s35 = int_to_ptr.vmem [resolvable:$true] %s34
      %37 = dma.hbm_to_vmem [thread:$0]  %s2, 128, %s35, [#allocation5]
    $region13: #{tpu_custom_call.1} parent=1 // pred_fallthru
      _
    // Predicated region
    $region14: #{tpu_custom_call.1} parent=1 // pred_check
      _
    $region15: #{tpu_custom_call.1} parent=1 // pred_check_branch
      %39 = sbr.rel (0) target = $region17
    $region16: #{tpu_custom_call.1} parent=1 // pred_region
      %s41 = ssub.s32 128, 128
      %42 = vsyncadd [#allocation8], %s41
      %s44 = sshll.u32 [#allocation7], 4
      %s45 = int_to_ptr.vmem [resolvable:$true] %s44
      %47 = dma.hbm_to_vmem [thread:$0]  %s3, 128, %s45, [#allocation8]
    $region17: #{tpu_custom_call.1} parent=1 // pred_fallthru
      _
    // Predicated region
    $region18: #{tpu_custom_call.1} parent=1 // pred_check
      _
    $region19: #{tpu_custom_call.1} parent=1 // pred_check_branch
      %49 = sbr.rel (0) target = $region21
    $region20: #{tpu_custom_call.1} parent=1 // pred_region
      _
    $region21: #{tpu_custom_call.1} parent=1 // pred_fallthru
      _
    // Predicated region
    $region22: #{tpu_custom_call.1} parent=1 // pred_check
      _
    $region23: #{tpu_custom_call.1} parent=1 // pred_check_branch
      %51 = sbr.rel (0) target = $region25
    $region24: #{tpu_custom_call.1} parent=1 // pred_region
      %s53 = ssub.s32 192, 192
      %54 = vsyncadd [#allocation8], %s53
      %s55 = sshll.u32 [#allocation9], 4
      %s56 = int_to_ptr.vmem [resolvable:$true] %s55
      %61 = dma.hbm_to_vmem [thread:$0]  %s5, 192, %s56, [#allocation8], 64, 64, 4
    $region25: #{tpu_custom_call.1} parent=1 // pred_fallthru
      _
    // Predicated region
    $region26: #{tpu_custom_call.1} parent=1 // pred_check
      _
    $region27: #{tpu_custom_call.1} parent=1 // pred_check_branch
      %63 = sbr.rel (0) target = $region29
    $region28: #{tpu_custom_call.1} parent=1 // pred_region
      _
    $region29: #{tpu_custom_call.1} parent=1 // pred_fallthru
      _
    // Predicated region
    $region30: #{tpu_custom_call.1} parent=1 // pred_check
      _
    $region31: #{tpu_custom_call.1} parent=1 // pred_check_branch
      %65 = sbr.rel (0) target = $region33
    $region32: #{tpu_custom_call.1} parent=1 // pred_region
      _
    $region33: #{tpu_custom_call.1} parent=1 // pred_fallthru
      _
    // Predicated region
    $region34: #{tpu_custom_call.1} parent=1 // pred_check
      _
    $region35: #{tpu_custom_call.1} parent=1 // pred_check_branch
      %67 = sbr.rel (0) target = $region37
    $region36: #{tpu_custom_call.1} parent=1 // pred_region
      _
    $region37: #{tpu_custom_call.1} parent=1 // pred_fallthru
      _
    // Predicated region
    $region38: #{tpu_custom_call.1} parent=1 // pred_check
      _
    $region39: #{tpu_custom_call.1} parent=1 // pred_check_branch
      %69 = sbr.rel (0) target = $region41
    $region40: #{tpu_custom_call.1} parent=1 // pred_region
      _
    $region41: #{tpu_custom_call.1} parent=1 // pred_fallthru
      _
    // Predicated region
    $region42: #{tpu_custom_call.1} parent=1 // pred_check
      _
    $region43: #{tpu_custom_call.1} parent=1 // pred_check_branch
      %71 = sbr.rel (0) target = $region45
    $region44: #{tpu_custom_call.1} parent=1 // pred_region
      _
    $region45: #{tpu_custom_call.1} parent=1 // pred_fallthru
      _
    // Predicated region
    $region46: #{tpu_custom_call.1} parent=1 // pred_check
      _
    $region47: #{tpu_custom_call.1} parent=1 // pred_check_branch
      %73 = sbr.rel (0) target = $region49
    $region48: #{tpu_custom_call.1} parent=1 // pred_region
      _
    $region49: #{tpu_custom_call.1} parent=1 // pred_fallthru
      _
    // Predicated region
    $region50: #{tpu_custom_call.1} parent=1 // pred_check
      _
    $region51: #{tpu_custom_call.1} parent=1 // pred_check_branch
      %75 = sbr.rel (0) target = $region53
    $region52: #{tpu_custom_call.1} parent=1 // pred_region
      %76 = dma.done [#allocation5], 128
    $region53: #{tpu_custom_call.1} parent=1 // pred_fallthru
      _
    // Predicated region
    $region54: #{tpu_custom_call.1} parent=1 // pred_check
      _
    $region55: #{tpu_custom_call.1} parent=1 // pred_check_branch
      %78 = sbr.rel (0) target = $region57
    $region56: #{tpu_custom_call.1} parent=1 // pred_region
      %79 = dma.done [#allocation8], 128
    $region57: #{tpu_custom_call.1} parent=1 // pred_fallthru
      _
    // Predicated region
    $region58: #{tpu_custom_call.1} parent=1 // pred_check
      _
    $region59: #{tpu_custom_call.1} parent=1 // pred_check_branch
      %81 = sbr.rel (0) target = $region61
    $region60: #{tpu_custom_call.1} parent=1 // pred_region
      %82 = dma.done [#allocation8], 192
    $region61: #{tpu_custom_call.1} parent=1 // pred_fallthru
      _
    %v84 = vld [vmem:[#allocation4] sm:$0xff]
    %v85 = vpack.c.bf16 %v84, %v84
    %v86 = vld [vmem:[#allocation7] sm:$0xff]
    %v87 = vpack.c.bf16 %v86, %v86
    %89 = vrot.lane.b32.xlu0 %v87, 16
    %v90 = vpop.permute.xlu0 %89
    %vm91 = vcmask 130048
    %v94 = vsel %vm91, %v85, %v90
    %v95 = vld [vmem:[#allocation9] sm:$0xf]
    %v96 = vld [vmem:[#allocation9 + $0x4] sm:$0xf]
    %v97 = vld [vmem:[#allocation9 + $0x8] sm:$0xf]
    %v98 = vld [vmem:[%s6] sm:$0x1]
    %v100 = vlaneseq
    %v101 = vshrl.u32 %v100, 7
    %v102 = vsub.s32 0, %v101
    %v103 = vrot.slane %v98, %v102
    %v108 = vunpack.c.l.b16 %v95
    %v109 = vunpack.c.l.b16 %v96
    %v110 = vunpack.c.l.b16 %v97
    %v111 = vpack.c.b16 %v109, %v108
    %v112 = vpack.c.b16 %v110, %v110
    %vm114 = vcmask 195584
    %v115 = vsel %vm114, %v94, 0
    %vm117 = vcmask 1043456
    %v119 = vsel %vm117, %v112, 0
    %121 = vmatprep.subr.bf16.mxu0 0
    %122 = vmatpush1.bf16.msra.mxu0 %v111
    %123 = vmatprep.subr.bf16.mxu0 0
    %124 = vmatpush1.bf16.msra.mxu0 %v119
    %125 = vmatprep.subr.bf16.mxu0 0
    %126 = vmatpush1.bf16.msra.mxu0 0
    %127 = vmatprep.subr.bf16.mxu0 0
    %128 = vmatpush1.bf16.msra.mxu0 0
    %129 = vmatprep.subr.bf16.mxu0 0
    %130 = vmatpush1.bf16.msra.mxu0 0
    %131 = vmatprep.subr.bf16.mxu0 0
    %132 = vmatpush1.bf16.msra.mxu0 0
    %133 = vmatprep.subr.bf16.mxu0 0
    %134 = vmatpush1.bf16.msra.mxu0 0
    %135 = vmatprep.subr.bf16.mxu0 0
    %136 = vmatpush1.bf16.msra.mxu0 0
    %137 = vmatprep.subr.bf16.mxu0 0
    %138 = vmatpush1.bf16.msra.mxu0 0
    %139 = vmatprep.subr.bf16.mxu0 0
    %140 = vmatpush1.bf16.msra.mxu0 0
    %141 = vmatprep.subr.bf16.mxu0 0
    %142 = vmatpush1.bf16.msra.mxu0 0
    %143 = vmatprep.subr.bf16.mxu0 0
    %144 = vmatpush1.bf16.msra.mxu0 0
    %145 = vmatprep.subr.bf16.mxu0 0
    %146 = vmatpush1.bf16.msra.mxu0 0
    %147 = vmatprep.subr.bf16.mxu0 0
    %148 = vmatpush1.bf16.msra.mxu0 0
    %149 = vmatprep.subr.bf16.mxu0 0
    %150 = vmatpush1.bf16.msra.mxu0 0
    %151 = vmatprep.subr.bf16.mxu0 0
    %152 = vmatpush1.bf16.msra.mxu0 0
    %153 = vmatprep.mubr.bf16.mxu0 0
    %154 = vmatmul.mubr.bf16.gmra.mrb[0].mxu0 %v115
    %v155 = vpop.f32.mrb[0].mxu0
    %v156 = vadd.f32 %v103, %v155
    %v157 = vpop.f32.mrb[0].mxu0
    %v158 = vpop.f32.mrb[0].mxu0
    %v159 = vpop.f32.mrb[0].mxu0
    %160 = vdwg.mxu0
    %v161 = vmax.f32 %v156, 0.0
    %v162 = vpack.c.bf16 %v161, %v161
    %v163 = vld [vmem:[%s7] sm:$0xf]
    %v164 = vld [vmem:[%s7 + $0x4] sm:$0xf]
    %v165 = vld [vmem:[%s7 + $0x8] sm:$0xf]
    %v166 = vld [vmem:[%s7 + $0xc] sm:$0xf]
    %v167 = vld [vmem:[%s8] sm:$0x1]
    %v169 = vlaneseq
    %v170 = vshrl.u32 %v169, 7
    %v171 = vsub.s32 0, %v170
    %v172 = vrot.slane %v167, %v171
    %v178 = vunpack.c.l.b16 %v163
    %v179 = vunpack.c.l.b16 %v164
    %v180 = vunpack.c.l.b16 %v165
    %v181 = vunpack.c.l.b16 %v166
    %v182 = vpack.c.b16 %v179, %v178
    %v183 = vpack.c.b16 %v181, %v180
    %vm186 = vcmask 261120
    %v188 = vsel %vm186, %v162, 0
    %190 = vmatprep.subr.bf16.mxu0 0
    %191 = vmatpush1.bf16.msra.mxu0 %v182
    %192 = vmatprep.subr.bf16.mxu0 0
    %193 = vmatpush1.bf16.msra.mxu0 %v183
    %194 = vmatprep.subr.bf16.mxu0 0
    %195 = vmatpush1.bf16.msra.mxu0 0
    %196 = vmatprep.subr.bf16.mxu0 0
    %197 = vmatpush1.bf16.msra.mxu0 0
    %198 = vmatprep.subr.bf16.mxu0 0
    %199 = vmatpush1.bf16.msra.mxu0 0
    %200 = vmatprep.subr.bf16.mxu0 0
    %201 = vmatpush1.bf16.msra.mxu0 0
    %202 = vmatprep.subr.bf16.mxu0 0
    %203 = vmatpush1.bf16.msra.mxu0 0
    %204 = vmatprep.subr.bf16.mxu0 0
    %205 = vmatpush1.bf16.msra.mxu0 0
    %206 = vmatprep.subr.bf16.mxu0 0
    %207 = vmatpush1.bf16.msra.mxu0 0
    %208 = vmatprep.subr.bf16.mxu0 0
    %209 = vmatpush1.bf16.msra.mxu0 0
    %210 = vmatprep.subr.bf16.mxu0 0
    %211 = vmatpush1.bf16.msra.mxu0 0
    %212 = vmatprep.subr.bf16.mxu0 0
    %213 = vmatpush1.bf16.msra.mxu0 0
    %214 = vmatprep.subr.bf16.mxu0 0
    %215 = vmatpush1.bf16.msra.mxu0 0
    %216 = vmatprep.subr.bf16.mxu0 0
    %217 = vmatpush1.bf16.msra.mxu0 0
    %218 = vmatprep.subr.bf16.mxu0 0
    %219 = vmatpush1.bf16.msra.mxu0 0
    %220 = vmatprep.subr.bf16.mxu0 0
    %221 = vmatpush1.bf16.msra.mxu0 0
    %222 = vmatprep.mubr.bf16.mxu0 0
    %223 = vmatmul.mubr.bf16.gmra.mrb[0].mxu0 %v188
    %v224 = vpop.f32.mrb[0].mxu0
    %v225 = vadd.f32 %v172, %v224
    %v226 = vpop.f32.mrb[0].mxu0
    %v227 = vpop.f32.mrb[0].mxu0
    %v228 = vpop.f32.mrb[0].mxu0
    %229 = vdwg.mxu0
    %v230 = vmax.f32 %v225, 0.0
    %v231 = vpack.c.bf16 %v230, %v230
    %v232 = vld [vmem:[%s9] sm:$0xf]
    %v233 = vld [vmem:[%s9 + $0x4] sm:$0xf]
    %v234 = vld [vmem:[%s9 + $0x8] sm:$0xf]
    %v235 = vld [vmem:[%s9 + $0xc] sm:$0xf]
    %v236 = vld [vmem:[%s10] sm:$0x1]
    %v238 = vlaneseq
    %v239 = vshrl.u32 %v238, 7
    %v240 = vsub.s32 0, %v239
    %v241 = vrot.slane %v236, %v240
    %v247 = vunpack.c.l.b16 %v232
    %v248 = vunpack.c.l.b16 %v233
    %v249 = vunpack.c.l.b16 %v234
    %v250 = vunpack.c.l.b16 %v235
    %v251 = vpack.c.b16 %v248, %v247
    %v252 = vpack.c.b16 %v250, %v249
    %v256 = vsel %vm186, %v231, 0
    %258 = vmatprep.subr.bf16.mxu0 0
    %259 = vmatpush1.bf16.msra.mxu0 %v251
    %260 = vmatprep.subr.bf16.mxu0 0
    %261 = vmatpush1.bf16.msra.mxu0 %v252
    %262 = vmatprep.subr.bf16.mxu0 0
    %263 = vmatpush1.bf16.msra.mxu0 0
    %264 = vmatprep.subr.bf16.mxu0 0
    %265 = vmatpush1.bf16.msra.mxu0 0
    %266 = vmatprep.subr.bf16.mxu0 0
    %267 = vmatpush1.bf16.msra.mxu0 0
    %268 = vmatprep.subr.bf16.mxu0 0
    %269 = vmatpush1.bf16.msra.mxu0 0
    %270 = vmatprep.subr.bf16.mxu0 0
    %271 = vmatpush1.bf16.msra.mxu0 0
    %272 = vmatprep.subr.bf16.mxu0 0
    %273 = vmatpush1.bf16.msra.mxu0 0
    %274 = vmatprep.subr.bf16.mxu0 0
    %275 = vmatpush1.bf16.msra.mxu0 0
    %276 = vmatprep.subr.bf16.mxu0 0
    %277 = vmatpush1.bf16.msra.mxu0 0
    %278 = vmatprep.subr.bf16.mxu0 0
    %279 = vmatpush1.bf16.msra.mxu0 0
    %280 = vmatprep.subr.bf16.mxu0 0
    %281 = vmatpush1.bf16.msra.mxu0 0
    %282 = vmatprep.subr.bf16.mxu0 0
    %283 = vmatpush1.bf16.msra.mxu0 0
    %284 = vmatprep.subr.bf16.mxu0 0
    %285 = vmatpush1.bf16.msra.mxu0 0
    %286 = vmatprep.subr.bf16.mxu0 0
    %287 = vmatpush1.bf16.msra.mxu0 0
    %288 = vmatprep.subr.bf16.mxu0 0
    %289 = vmatpush1.bf16.msra.mxu0 0
    %290 = vmatprep.mubr.bf16.mxu0 0
    %291 = vmatmul.mubr.bf16.gmra.mrb[0].mxu0 %v256
    %v292 = vpop.f32.mrb[0].mxu0
    %v293 = vadd.f32 %v241, %v292
    %v294 = vpop.f32.mrb[0].mxu0
    %v295 = vpop.f32.mrb[0].mxu0
    %v296 = vpop.f32.mrb[0].mxu0
    %297 = vdwg.mxu0
    %v298 = vtanh.pop %v293
    %s299 = sld [smem:[#allocation2]]
    %v300 = vstv %s299
    %v301 = vmul.f32 %v298, %v300
    %s302 = sld [smem:[#allocation3]]
    %v303 = vstv %s302
    %v304 = vadd.f32 %v301, %v303
    %v305 = vld [vmem:[%s11] sm:$0x1]
    %vm306 = vcmp.gt.f32.partialorder %v305, 0.5
    %v307 = vmul.f32 %v304, 1.442695
    %v308 = vpow.pop %v307
    %v309 = vsel %vm306, 1, 0
    %v310 = vlaneseq
    %v311 = vshrl.u32 %v310, 7
    %v312 = vsub.s32 0, %v311
    %v313 = vrot.slane %v309, %v312
    %vm314 = vcmp.eq.s32.totalorder %v313, 1
    %v315 = vsel %vm314, 1.0, %v308
    %v316 = vmul.f32 %v84, %v315
    %318 = vrot.lane.b32.xlu0 %v293, 112
    %v319 = vpop.permute.xlu0 %318
    %v321 = vadd.f32 %v316, %v319
    %322 = vst.msk [vmem:[#allocation10] sm:$0xff] %vm91, %v321
    %v323 = vld [vmem:[%s4] sm:$0xff]
    %v324 = vsub.f32 1.0, %v305
    %v326 = vlaneseq
    %v327 = vshrl.u32 %v326, 7
    %v328 = vsub.s32 0, %v327
    %v329 = vrot.slane %v324, %v328
    %v331 = vmul.f32 %v304, %v329
    %v332 = vsel %vm91, %v331, 0.0
    %333 = vadd.xlane.f32.xlu0 %v332
    %v334 = vpop.xlane.xlu0 %333
    %v335 = vadd.f32 %v323, %v334
    %vm336 = vcmask 7168
    %337 = vst.msk [vmem:[%s13] sm:$0xff] %vm336, %v335
    // Predicated region
    $region62: #{tpu_custom_call.1} parent=1 // pred_check
      _
    $region63: #{tpu_custom_call.1} parent=1 // pred_check_branch
      %339 = sbr.rel (0) target = $region65
    $region64: #{tpu_custom_call.1} parent=1 // pred_region
      %s341 = ssub.s32 128, 128
      %342 = vsyncadd [#allocation6], %s341
      %s344 = sshll.u32 [#allocation10], 4
      %s345 = int_to_ptr.vmem [resolvable:$true] %s344
      %347 = dma.vmem_to_hbm [thread:$0]  %s345, 128, %s12, [#allocation6]
    $region65: #{tpu_custom_call.1} parent=1 // pred_fallthru
      _
    // Predicated region
    $region66: #{tpu_custom_call.1} parent=1 // pred_check
      _
    $region67: #{tpu_custom_call.1} parent=1 // pred_check_branch
      %349 = sbr.rel (0) target = $region69
    $region68: #{tpu_custom_call.1} parent=1 // pred_region
      _
    $region69: #{tpu_custom_call.1} parent=1 // pred_fallthru
      _
    // Predicated region
    $region70: #{tpu_custom_call.1} parent=1 // pred_check
      _
    $region71: #{tpu_custom_call.1} parent=1 // pred_check_branch
      %351 = sbr.rel (0) target = $region73
    $region72: #{tpu_custom_call.1} parent=1 // pred_region
      %352 = dma.done [#allocation6], 128
    $region73: #{tpu_custom_call.1} parent=1 // pred_fallthru
      _
    // Predicated region
    $region74: #{tpu_custom_call.1} parent=1 // pred_check
      _
    $region75: #{tpu_custom_call.1} parent=1 // pred_check_branch
      %354 = sbr.rel (0) target = $region77
    $region76: #{tpu_custom_call.1} parent=1 // pred_region
      _
    $region77: #{tpu_custom_call.1} parent=1 // pred_fallthru
      _
    %355 = vsyncpa [#allocation5], 1
    %356 = vsyncpa [#allocation8], 1
    %357 = vsyncpa [#allocation6], 1

</llo_original>
